<compile_context>
chip_gen: v7x
topology: tpu7x:2x2x1
jax: 0.10.0
libtpu: 0.0.40
codegen_flags: <defaults>
</compile_context>

<pallas_src>
import jax
import jax.numpy as jnp
from jax.experimental import pallas as pl
from jax.experimental.pallas import tpu as pltpu


def adapter_kernel(x_ref, w1_ref, b1_ref, w2_ref, b2_ref, o_ref):
    # x_ref:  (tm, D)   tile of flattened tokens (input dtype)
    # w1_ref: (D, R)    down-projection weight, pre-transposed (input dtype)
    # b1_ref: (1, R)    f32
    # w2_ref: (R, D)    up-projection weight, pre-transposed (input dtype)
    # b2_ref: (1, D)    f32
    x = x_ref[...]

    # ln1: down projection on the MXU, f32 accumulate.
    h = jnp.dot(x, w1_ref[...], preferred_element_type=jnp.float32)
    h = h + b1_ref[...]

    # QuickGELU in f32 on the narrow (tm, R) intermediate: x * sigmoid(1.702 x)
    h = h * jax.nn.sigmoid(1.702 * h)

    # Dropout with p=0 (module default / inference) is identity.
    # TODO(synk): stochastic dropout for p>0 would need pltpu.prng_* in-kernel.

    # ln2: up projection; feed the MXU in the input dtype, accumulate in f32.
    h = h.astype(x_ref.dtype)
    out = jnp.dot(h, w2_ref[...], preferred_element_type=jnp.float32)
    out = out + b2_ref[...]

    o_ref[...] = out.astype(o_ref.dtype)


def _round_up(a: int, m: int) -> int:
    return ((a + m - 1) // m) * m


def adapter_super_noout(x, w1, b1, w2, b2, *, tm=256):
    """Fused bottleneck adapter forward.

    x:  (B, N, D)            input tokens
    w1: (R, D), b1: (R,)     ln1 (PyTorch Linear layout: out_features x in_features)
    w2: (D, R), b2: (D,)     ln2
    Returns ln2(quickgelu(ln1(x))) with shape (B, N, D).
    """
    B, N, D = x.shape
    R, D_ = w1.shape
    assert D_ == D and w2.shape == (D, R)

    M = B * N
    x2 = x.reshape(M, D)

    # Row tile: large (amortizes per-step overhead, fills the MXU), but never
    # larger than the (8-rounded) row count. Pad M so the grid divides evenly.
    tm_eff = min(tm, _round_up(M, 8))
    M_pad = _round_up(M, tm_eff)
    if M_pad != M:
        x2 = jnp.pad(x2, ((0, M_pad - M), (0, 0)))

    # Weights in MXU-native (input) dtype; biases in f32 for the f32 epilogues.
    w1_t = w1.T.astype(x.dtype)                 # (D, R)
    w2_t = w2.T.astype(x.dtype)                 # (R, D)
    b1_2 = b1.reshape(1, R).astype(jnp.float32)
    b2_2 = b2.reshape(1, D).astype(jnp.float32)

    itemsize = jnp.dtype(x.dtype).itemsize
    # VMEM budget: double-buffered x/out tiles + weights (R pads to 128 lanes)
    # + biases, with 2x headroom; capped at 64 MiB so it is valid on v7x too.
    tile_bytes = tm_eff * D * itemsize
    w_bytes = D * max(R, 128) * itemsize + max(R, 128) * D * itemsize
    bias_bytes = (max(R, 128) + max(D, 128)) * 4
    vmem_needed = 2 * (2 * tile_bytes) + 2 * (w_bytes + bias_bytes)
    vmem_limit = int(min(64 * 2**20, max(32 * 2**20, 2 * vmem_needed)))

    cost = pl.CostEstimate(
        flops=2 * 2 * M * D * R,                    # two matmuls
        transcendentals=M * R,                      # sigmoid on the bottleneck
        bytes_accessed=2 * M * D * itemsize + 2 * D * R * itemsize + (R + D) * 4,
    )

    out2 = pl.pallas_call(
        adapter_kernel,
        out_shape=jax.ShapeDtypeStruct((M_pad, D), x.dtype),
        grid_spec=pltpu.PrefetchScalarGridSpec(
            num_scalar_prefetch=0,
            grid=(M_pad // tm_eff,),
            in_specs=[
                pl.BlockSpec((tm_eff, D), lambda i: (i, 0)),   # x tile
                pl.BlockSpec((D, R), lambda i: (0, 0)),        # w1^T (resident)
                pl.BlockSpec((1, R), lambda i: (0, 0)),        # b1
                pl.BlockSpec((R, D), lambda i: (0, 0)),        # w2^T (resident)
                pl.BlockSpec((1, D), lambda i: (0, 0)),        # b2
            ],
            out_specs=pl.BlockSpec((tm_eff, D), lambda i: (i, 0)),
        ),
        compiler_params=pltpu.CompilerParams(
            dimension_semantics=("parallel",),
            vmem_limit_bytes=vmem_limit,
        ),
        cost_estimate=cost,
    )(x2, w1_t, b1_2, w2_t, b2_2)

    if M_pad != M:
        out2 = out2[:M]
    return out2.reshape(B, N, D)


def _xavier_uniform(key, fan_out, fan_in, dtype=jnp.float32):
    # matches torch.nn.init.xavier_uniform_ for a Linear weight of shape (out, in)
    limit = (6.0 / (fan_in + fan_out)) ** 0.5
    return jax.random.uniform(key, (fan_out, fan_in), dtype=dtype,
                              minval=-limit, maxval=limit)


if __name__ == "__main__":
    # Small shapes consistent with the module: batch=2, seq=8, embed_dims=32,
    # reduction_dims=8.
    B, N, D, R = 2, 8, 32, 8

    key = jax.random.PRNGKey(0)
    kx, kw1, kb1, kw2, kb2 = jax.random.split(key, 5)

    x = jax.random.normal(kx, (B, N, D), dtype=jnp.float32)

    # ln1: Linear(embed_dims -> reduction_dims): weight (R, D), bias (R,)
    w1 = _xavier_uniform(kw1, R, D)
    b1 = 1e-6 * jax.random.normal(kb1, (R,), dtype=jnp.float32)
    # ln2: Linear(reduction_dims -> embed_dims): weight (D, R), bias (D,)
    w2 = _xavier_uniform(kw2, D, R)
    b2 = 1e-6 * jax.random.normal(kb2, (D,), dtype=jnp.float32)

    out = adapter_super_noout(x, w1, b1, w2, b2)
    out = jax.block_until_ready(out)

    # Pure-JAX reference of the PyTorch forward (dropout p=0 is identity).
    h_ref = x @ w1.T + b1
    h_ref = h_ref * jax.nn.sigmoid(1.702 * h_ref)
    ref = h_ref @ w2.T + b2

    assert out.shape == (B, N, D)
    assert jnp.allclose(out, ref, atol=1e-5, rtol=1e-5), "mismatch vs reference"
    print("KERNEL_OK")
</pallas_src>

<mosaic_0001>
module attributes {stable_mosaic.version = 11 : i64} {
  func.func @adapter_kernel(%arg0: i32, %arg1: memref<16x32xf32, #tpu.memory_space<vmem>>, %arg2: memref<32x8xf32, #tpu.memory_space<vmem>>, %arg3: memref<1x8xf32, #tpu.memory_space<vmem>>, %arg4: memref<8x32xf32, #tpu.memory_space<vmem>>, %arg5: memref<1x32xf32, #tpu.memory_space<vmem>>, %arg6: memref<16x32xf32, #tpu.memory_space<vmem>>) attributes {dimension_semantics = [#tpu.dimension_semantics<parallel>], iteration_bounds = array<i64: 1>, scalar_prefetch = 0 : i64, scratch_operands = 0 : i64, tpu.core_type = #tpu.core_type<tc>, window_params = [{transform_indices = @transform_0, window_bounds = array<i64: 16, 32>}, {pipeline_mode = #tpu.pipeline_mode<synchronous>, transform_indices = @transform_1, window_bounds = array<i64: 32, 8>}, {pipeline_mode = #tpu.pipeline_mode<synchronous>, transform_indices = @transform_2, window_bounds = array<i64: 1, 8>}, {pipeline_mode = #tpu.pipeline_mode<synchronous>, transform_indices = @transform_3, window_bounds = array<i64: 8, 32>}, {pipeline_mode = #tpu.pipeline_mode<synchronous>, transform_indices = @transform_4, window_bounds = array<i64: 1, 32>}, {transform_indices = @transform_5, window_bounds = array<i64: 16, 32>}]} {
    %c0 = arith.constant 0 : index
    %c0_0 = arith.constant 0 : index
    %0 = vector.load %arg1[%c0, %c0_0] : memref<16x32xf32, #tpu.memory_space<vmem>>, vector<16x32xf32>
    %c0_1 = arith.constant 0 : index
    %c0_2 = arith.constant 0 : index
    %1 = vector.load %arg2[%c0_1, %c0_2] : memref<32x8xf32, #tpu.memory_space<vmem>>, vector<32x8xf32>
    %cst = arith.constant dense<0.000000e+00> : vector<16x8xf32>
    %2 = tpu.matmul %0, %1, %cst {dimension_numbers = #tpu.dot_dimension_numbers<[1], [0], [0], [1], [0, 0, 1, 1], [], []>} : vector<16x32xf32>, vector<32x8xf32>, vector<16x8xf32> -> vector<16x8xf32>
    %c0_3 = arith.constant 0 : index
    %c0_4 = arith.constant 0 : index
    %3 = vector.load %arg3[%c0_3, %c0_4] : memref<1x8xf32, #tpu.memory_space<vmem>>, vector<1x8xf32>
    %4 = vector.broadcast %3 : vector<1x8xf32> to vector<16x8xf32>
    %5 = arith.addf %2, %4 : vector<16x8xf32>
    %cst_5 = arith.constant 1.702000e+00 : f32
    %6 = vector.broadcast %cst_5 : f32 to vector<16x8xf32>
    %7 = arith.mulf %6, %5 : vector<16x8xf32>
    %8 = arith.negf %7 : vector<16x8xf32>
    %9 = math.exp %8 : vector<16x8xf32>
    %cst_6 = arith.constant 1.000000e+00 : f32
    %10 = vector.broadcast %cst_6 : f32 to vector<16x8xf32>
    %11 = arith.addf %10, %9 : vector<16x8xf32>
    %12 = arith.divf %10, %11 : vector<16x8xf32>
    %13 = arith.mulf %5, %12 : vector<16x8xf32>
    %c0_7 = arith.constant 0 : index
    %c0_8 = arith.constant 0 : index
    %14 = vector.load %arg4[%c0_7, %c0_8] : memref<8x32xf32, #tpu.memory_space<vmem>>, vector<8x32xf32>
    %cst_9 = arith.constant dense<0.000000e+00> : vector<16x32xf32>
    %15 = tpu.matmul %13, %14, %cst_9 {dimension_numbers = #tpu.dot_dimension_numbers<[1], [0], [0], [1], [0, 0, 1, 1], [], []>} : vector<16x8xf32>, vector<8x32xf32>, vector<16x32xf32> -> vector<16x32xf32>
    %c0_10 = arith.constant 0 : index
    %c0_11 = arith.constant 0 : index
    %16 = vector.load %arg5[%c0_10, %c0_11] : memref<1x32xf32, #tpu.memory_space<vmem>>, vector<1x32xf32>
    %17 = vector.broadcast %16 : vector<1x32xf32> to vector<16x32xf32>
    %18 = arith.addf %15, %17 : vector<16x32xf32>
    %c0_12 = arith.constant 0 : index
    %c0_13 = arith.constant 0 : index
    %19 = vector.load %arg6[%c0_12, %c0_13] : memref<16x32xf32, #tpu.memory_space<vmem>>, vector<16x32xf32>
    tpu.vector_store %arg6[%c0_12, %c0_13], %18 {strides = array<i32>} : memref<16x32xf32, #tpu.memory_space<vmem>>, vector<16x32xf32>,
    return
  }
  func.func @transform_0(%arg0: i32) -> (i32, i32) {
    %c0_i32 = arith.constant 0 : i32
    %c0_i32_0 = arith.constant 0 : i32
    return %arg0, %c0_i32 : i32, i32
  }
  func.func @transform_1(%arg0: i32) -> (i32, i32) {
    %c0_i32 = arith.constant 0 : i32
    %c0_i32_0 = arith.constant 0 : i32
    %c0_i32_1 = arith.constant 0 : i32
    return %c0_i32, %c0_i32_0 : i32, i32
  }
  func.func @transform_2(%arg0: i32) -> (i32, i32) {
    %c0_i32 = arith.constant 0 : i32
    %c0_i32_0 = arith.constant 0 : i32
    %c0_i32_1 = arith.constant 0 : i32
    return %c0_i32, %c0_i32_0 : i32, i32
  }
  func.func @transform_3(%arg0: i32) -> (i32, i32) {
    %c0_i32 = arith.constant 0 : i32
    %c0_i32_0 = arith.constant 0 : i32
    %c0_i32_1 = arith.constant 0 : i32
    return %c0_i32, %c0_i32_0 : i32, i32
  }
  func.func @transform_4(%arg0: i32) -> (i32, i32) {
    %c0_i32 = arith.constant 0 : i32
    %c0_i32_0 = arith.constant 0 : i32
    %c0_i32_1 = arith.constant 0 : i32
    return %c0_i32, %c0_i32_0 : i32, i32
  }
  func.func @transform_5(%arg0: i32) -> (i32, i32) {
    %c0_i32 = arith.constant 0 : i32
    %c0_i32_0 = arith.constant 0 : i32
    return %arg0, %c0_i32 : i32, i32
  }
}

</mosaic_0001>

<llo_original>
// kernel: tpu_custom_call.1
$region0: #{tpu_custom_call.1}
  #allocation0 [shape = 'u32[]', space=smem, size = 0x4, offset = 0x4, fixed_abs, tag = 'smem constant byte address 0x4 - core index']
  #allocation1 [shape = 'u32[144,128]{1,0:T(1,128)}', space=vmem, size = 0x12000, scoped, tag = 'internal scratch']
  %s0 = inlined_call_operand.vmem [shape: f32[16,32], index: 0, kind: input, shape index: {}]
  %s1 = inlined_call_operand.vmem [shape: f32[32,8], index: 1, kind: input, shape index: {}]
  %s2 = inlined_call_operand.vmem [shape: f32[1,8], index: 2, kind: input, shape index: {}]
  %s3 = inlined_call_operand.vmem [shape: f32[8,32], index: 3, kind: input, shape index: {}]
  %s4 = inlined_call_operand.vmem [shape: f32[1,32], index: 4, kind: input, shape index: {}]
  %s5 = inlined_call_operand.hbm [shape: f32[16,32], index: 5, kind: output, shape index: {}]
  %s6 = sld [smem:[#allocation0]]
  $region30: #{tpu_custom_call.1} parent=0
    _
  %s8 = ssub.s32 1, %s6
  %s9 = scalar_select 0, %s8, %s6
  $region1: #{tpu_custom_call.1} parent=0
    #allocation2 [shape = 'u8[8192]{0}', space=vmem, size = 0x2000, scoped, tag = 'output window, operand 0, single buffered']
    #allocation3 [shape = 's32[1]{0}', space=sflag, size = 0x4, scoped, tag = 'scoped memory for tpu_custom_call.1']
    %10 = vsyncpa [#allocation3], 0
    // Predicated region
    $region2: #{tpu_custom_call.1} parent=1 // pred_check
      _
    $region3: #{tpu_custom_call.1} parent=1 // pred_check_branch
      %12 = sbr.rel (0) target = $region5
    $region4: #{tpu_custom_call.1} parent=1 // pred_region
      _
    $region5: #{tpu_custom_call.1} parent=1 // pred_fallthru
      _
    // Predicated region
    $region6: #{tpu_custom_call.1} parent=1 // pred_check
      _
    $region7: #{tpu_custom_call.1} parent=1 // pred_check_branch
      %14 = sbr.rel (0) target = $region9
    $region8: #{tpu_custom_call.1} parent=1 // pred_region
      _
    $region9: #{tpu_custom_call.1} parent=1 // pred_fallthru
      _
    // Predicated region
    $region10: #{tpu_custom_call.1} parent=1 // pred_check
      _
    $region11: #{tpu_custom_call.1} parent=1 // pred_check_branch
      %16 = sbr.rel (0) target = $region13
    $region12: #{tpu_custom_call.1} parent=1 // pred_region
      _
    $region13: #{tpu_custom_call.1} parent=1 // pred_fallthru
      _
    // Predicated region
    $region14: #{tpu_custom_call.1} parent=1 // pred_check
      _
    $region15: #{tpu_custom_call.1} parent=1 // pred_check_branch
      %18 = sbr.rel (0) target = $region17
    $region16: #{tpu_custom_call.1} parent=1 // pred_region
      _
    $region17: #{tpu_custom_call.1} parent=1 // pred_fallthru
      _
    // Predicated region
    $region18: #{tpu_custom_call.1} parent=1 // pred_check
      _
    $region19: #{tpu_custom_call.1} parent=1 // pred_check_branch
      %20 = sbr.rel (0) target = $region21
    $region20: #{tpu_custom_call.1} parent=1 // pred_region
      _
    $region21: #{tpu_custom_call.1} parent=1 // pred_fallthru
      _
    %v21 = vld [vmem:[%s0] sm:$0xff]
    %v22 = vld [vmem:[%s0 + $0x8] sm:$0xff]
    %v23 = vld [vmem:[%s1] sm:$0xff]
    %v24 = vld [vmem:[%s1 + $0x8] sm:$0xff]
    %v25 = vld [vmem:[%s1 + $0x10] sm:$0xff]
    %v26 = vld [vmem:[%s1 + $0x18] sm:$0xff]
    %v27 = vld [vmem:[%s2] sm:$0x1]
    %v29 = vlaneseq
    %v30 = vshrl.u32 %v29, 7
    %v31 = vsub.s32 0, %v30
    %v32 = vrot.slane %v27, %v31
    %vm34 = vcmask 261120
    %v36 = vsel %vm34, %v21, 0
    %v39 = vsel %vm34, %v22, 0
    %41 = vmatprep.subr.mxu0 0.0
    %42 = vmatpush1.msra.mxu0 %v23
    %43 = vmatprep.subr.mxu0 0.0
    %44 = vmatpush1.msra.mxu0 %v24
    %45 = vmatprep.subr.mxu0 0.0
    %46 = vmatpush1.msra.mxu0 %v25
    %47 = vmatprep.subr.mxu0 0.0
    %48 = vmatpush1.msra.mxu0 %v26
    %49 = vmatprep.subr.mxu0 0.0
    %50 = vmatpush1.msra.mxu0 0.0
    %51 = vmatprep.subr.mxu0 0.0
    %52 = vmatpush1.msra.mxu0 0.0
    %53 = vmatprep.subr.mxu0 0.0
    %54 = vmatpush1.msra.mxu0 0.0
    %55 = vmatprep.subr.mxu0 0.0
    %56 = vmatpush1.msra.mxu0 0.0
    %57 = vmatprep.subr.mxu0 0.0
    %58 = vmatpush1.msra.mxu0 0.0
    %59 = vmatprep.subr.mxu0 0.0
    %60 = vmatpush1.msra.mxu0 0.0
    %61 = vmatprep.subr.mxu0 0.0
    %62 = vmatpush1.msra.mxu0 0.0
    %63 = vmatprep.subr.mxu0 0.0
    %64 = vmatpush1.msra.mxu0 0.0
    %65 = vmatprep.subr.mxu0 0.0
    %66 = vmatpush1.msra.mxu0 0.0
    %67 = vmatprep.subr.mxu0 0.0
    %68 = vmatpush1.msra.mxu0 0.0
    %69 = vmatprep.subr.mxu0 0.0
    %70 = vmatpush1.msra.mxu0 0.0
    %71 = vmatprep.subr.mxu0 0.0
    %72 = vmatpush1.msra.mxu0 0.0
    %73 = vmatprep.subr.mxu0 0.0
    %74 = vmatpush1.msra.mxu0 0.0
    %75 = vmatprep.subr.mxu0 0.0
    %76 = vmatpush1.msra.mxu0 0.0
    %77 = vmatprep.subr.mxu0 0.0
    %78 = vmatpush1.msra.mxu0 0.0
    %79 = vmatprep.subr.mxu0 0.0
    %80 = vmatpush1.msra.mxu0 0.0
    %81 = vmatprep.subr.mxu0 0.0
    %82 = vmatpush1.msra.mxu0 0.0
    %83 = vmatprep.subr.mxu0 0.0
    %84 = vmatpush1.msra.mxu0 0.0
    %85 = vmatprep.subr.mxu0 0.0
    %86 = vmatpush1.msra.mxu0 0.0
    %87 = vmatprep.subr.mxu0 0.0
    %88 = vmatpush1.msra.mxu0 0.0
    %89 = vmatprep.subr.mxu0 0.0
    %90 = vmatpush1.msra.mxu0 0.0
    %91 = vmatprep.subr.mxu0 0.0
    %92 = vmatpush1.msra.mxu0 0.0
    %93 = vmatprep.subr.mxu0 0.0
    %94 = vmatpush1.msra.mxu0 0.0
    %95 = vmatprep.subr.mxu0 0.0
    %96 = vmatpush1.msra.mxu0 0.0
    %97 = vmatprep.subr.mxu0 0.0
    %98 = vmatpush1.msra.mxu0 0.0
    %99 = vmatprep.subr.mxu0 0.0
    %100 = vmatpush1.msra.mxu0 0.0
    %101 = vmatprep.subr.mxu0 0.0
    %102 = vmatpush1.msra.mxu0 0.0
    %103 = vmatprep.subr.mxu0 0.0
    %104 = vmatpush1.msra.mxu0 0.0
    %105 = vmatprep.mubr.f32.mxu0 0.0
    %106 = vmatmul.mubr.f32.gmra.mrb[0].mxu0 %v36
    %v107 = vpop.f32.mrb[0].mxu0
    %v108 = vadd.f32 %v32, %v107
    %v109 = vpop.f32.mrb[0].mxu0
    %110 = vmatprep.mubr.f32.mxu0 0.0
    %111 = vmatmul.mubr.f32.gmra.mrb[0].mxu0 %v39
    %v112 = vpop.f32.mrb[0].mxu0
    %v113 = vadd.f32 %v32, %v112
    %v114 = vpop.f32.mrb[0].mxu0
    %115 = vdwg.mxu0
    %v116 = vmul.f32 %v108, 1.702
    %v117 = vmul.f32 %v113, 1.702
    %v118 = vxor.u32 %v116, 2147483648
    %v119 = vxor.u32 %v117, 2147483648
    %v120 = vmul.f32 %v118, 1.442695
    %v121 = vpow.pop %v120
    %v122 = vmul.f32 %v119, 1.442695
    %v123 = vpow.pop %v122
    %v124 = vadd.f32 %v121, 1.0
    %v125 = vadd.f32 %v123, 1.0
    %v126 = vrcp.pop %v124
    %v127 = vmul.f32 1.0, %v126
    %v128 = vrcp.pop %v125
    %v129 = vmul.f32 1.0, %v128
    %v130 = vmul.f32 %v108, %v127
    %v131 = vmul.f32 %v113, %v129
    %v132 = vld [vmem:[%s3] sm:$0xff]
    %v133 = vld [vmem:[%s4] sm:$0x1]
    %v135 = vlaneseq
    %v136 = vshrl.u32 %v135, 7
    %v137 = vsub.s32 0, %v136
    %v138 = vrot.slane %v133, %v137
    %vm140 = vcmask 64512
    %v142 = vsel %vm140, %v130, 0
    %v145 = vsel %vm140, %v131, 0
    %147 = vmatprep.subr.mxu0 0.0
    %148 = vmatpush1.msra.mxu0 %v132
    %149 = vmatprep.subr.mxu0 0.0
    %150 = vmatpush1.msra.mxu0 0.0
    %151 = vmatprep.subr.mxu0 0.0
    %152 = vmatpush1.msra.mxu0 0.0
    %153 = vmatprep.subr.mxu0 0.0
    %154 = vmatpush1.msra.mxu0 0.0
    %155 = vmatprep.subr.mxu0 0.0
    %156 = vmatpush1.msra.mxu0 0.0
    %157 = vmatprep.subr.mxu0 0.0
    %158 = vmatpush1.msra.mxu0 0.0
    %159 = vmatprep.subr.mxu0 0.0
    %160 = vmatpush1.msra.mxu0 0.0
    %161 = vmatprep.subr.mxu0 0.0
    %162 = vmatpush1.msra.mxu0 0.0
    %163 = vmatprep.subr.mxu0 0.0
    %164 = vmatpush1.msra.mxu0 0.0
    %165 = vmatprep.subr.mxu0 0.0
    %166 = vmatpush1.msra.mxu0 0.0
    %167 = vmatprep.subr.mxu0 0.0
    %168 = vmatpush1.msra.mxu0 0.0
    %169 = vmatprep.subr.mxu0 0.0
    %170 = vmatpush1.msra.mxu0 0.0
    %171 = vmatprep.subr.mxu0 0.0
    %172 = vmatpush1.msra.mxu0 0.0
    %173 = vmatprep.subr.mxu0 0.0
    %174 = vmatpush1.msra.mxu0 0.0
    %175 = vmatprep.subr.mxu0 0.0
    %176 = vmatpush1.msra.mxu0 0.0
    %177 = vmatprep.subr.mxu0 0.0
    %178 = vmatpush1.msra.mxu0 0.0
    %179 = vmatprep.subr.mxu0 0.0
    %180 = vmatpush1.msra.mxu0 0.0
    %181 = vmatprep.subr.mxu0 0.0
    %182 = vmatpush1.msra.mxu0 0.0
    %183 = vmatprep.subr.mxu0 0.0
    %184 = vmatpush1.msra.mxu0 0.0
    %185 = vmatprep.subr.mxu0 0.0
    %186 = vmatpush1.msra.mxu0 0.0
    %187 = vmatprep.subr.mxu0 0.0
    %188 = vmatpush1.msra.mxu0 0.0
    %189 = vmatprep.subr.mxu0 0.0
    %190 = vmatpush1.msra.mxu0 0.0
    %191 = vmatprep.subr.mxu0 0.0
    %192 = vmatpush1.msra.mxu0 0.0
    %193 = vmatprep.subr.mxu0 0.0
    %194 = vmatpush1.msra.mxu0 0.0
    %195 = vmatprep.subr.mxu0 0.0
    %196 = vmatpush1.msra.mxu0 0.0
    %197 = vmatprep.subr.mxu0 0.0
    %198 = vmatpush1.msra.mxu0 0.0
    %199 = vmatprep.subr.mxu0 0.0
    %200 = vmatpush1.msra.mxu0 0.0
    %201 = vmatprep.subr.mxu0 0.0
    %202 = vmatpush1.msra.mxu0 0.0
    %203 = vmatprep.subr.mxu0 0.0
    %204 = vmatpush1.msra.mxu0 0.0
    %205 = vmatprep.subr.mxu0 0.0
    %206 = vmatpush1.msra.mxu0 0.0
    %207 = vmatprep.subr.mxu0 0.0
    %208 = vmatpush1.msra.mxu0 0.0
    %209 = vmatprep.subr.mxu0 0.0
    %210 = vmatpush1.msra.mxu0 0.0
    %211 = vmatprep.mubr.f32.mxu0 0.0
    %212 = vmatmul.mubr.f32.gmra.mrb[0].mxu0 %v142
    %v213 = vpop.f32.mrb[0].mxu0
    %v214 = vadd.f32 %v138, %v213
    %v215 = vpop.f32.mrb[0].mxu0
    %216 = vmatprep.mubr.f32.mxu0 0.0
    %217 = vmatmul.mubr.f32.gmra.mrb[0].mxu0 %v145
    %v218 = vpop.f32.mrb[0].mxu0
    %v219 = vadd.f32 %v138, %v218
    %v220 = vpop.f32.mrb[0].mxu0
    %221 = vdwg.mxu0
    %222 = vst.msk [vmem:[#allocation2] sm:$0xff] %vm34, %v214
    %223 = vst.msk [vmem:[#allocation2 + $0x8] sm:$0xff] %vm34, %v219
    // Predicated region
    $region22: #{tpu_custom_call.1} parent=1 // pred_check
      _
    $region23: #{tpu_custom_call.1} parent=1 // pred_check_branch
      %225 = sbr.rel (0) target = $region25
    $region24: #{tpu_custom_call.1} parent=1 // pred_region
      %s227 = ssub.s32 256, 256
      %228 = vsyncadd [#allocation3], %s227
      %s229 = sshll.u32 [#allocation2], 4
      %s230 = int_to_ptr.vmem [resolvable:$true] %s229
      %235 = dma.vmem_to_hbm [thread:$0]  %s230, 256, %s5, [#allocation3], 128, 128, 8
    $region25: #{tpu_custom_call.1} parent=1 // pred_fallthru
      _
    // Predicated region
    $region26: #{tpu_custom_call.1} parent=1 // pred_check
      _
    $region27: #{tpu_custom_call.1} parent=1 // pred_check_branch
      %237 = sbr.rel (0) target = $region29
    $region28: #{tpu_custom_call.1} parent=1 // pred_region
      %238 = dma.done [#allocation3], 256
    $region29: #{tpu_custom_call.1} parent=1 // pred_fallthru
      _
    %239 = vsyncpa [#allocation3], 1

</llo_original>
